<compile_context>
chip_gen: v7x
topology: tpu7x:2x2x1
jax: 0.10.0
libtpu: 0.0.40
codegen_flags: <defaults>
</compile_context>

<pallas_src>
import functools

import jax
import jax.numpy as jnp
from jax.experimental import pallas as pl
from jax.experimental.pallas import tpu as pltpu

_MAX_TILE_ROWS = 4096   # per-tile row cap (keeps per-tile VMEM in single-digit MiB)


def _round_up(x, m):
    return ((x + m - 1) // m) * m


def _maybe_cast(a, dtype):
    return a if a.dtype == dtype else a.astype(dtype)


def _recursive_mlp_kernel(x_ref,
                          w0_ref, b0_ref,
                          w1_ref, b1_ref,
                          w2_ref, b2_ref,
                          wo_ref, bo_ref,
                          o_ref):
    """Whole recursive-MLP forward for one batch tile, fused in VMEM."""
    mm_dtype = w0_ref.dtype          # matmul operand dtype (f32 or bf16)

    # Hoist bias reads; biases are kept/added in f32.
    b0 = b0_ref[...]
    b1 = b1_ref[...]
    b2 = b2_ref[...]
    bo = bo_ref[...]

    x = _maybe_cast(x_ref[...], mm_dtype)

    # level 0 (innermost RecursiveMLPBlock): Linear + ReLU, no residual
    h0 = jnp.dot(x, w0_ref[...], preferred_element_type=jnp.float32) + b0
    h0 = jnp.maximum(h0, 0.0)

    # level 1: Linear + ReLU + residual
    h1 = jnp.dot(_maybe_cast(h0, mm_dtype), w1_ref[...],
                 preferred_element_type=jnp.float32) + b1
    h1 = jnp.maximum(h1, 0.0) + h0

    # level 2 (top): Linear + ReLU + residual
    h2 = jnp.dot(_maybe_cast(h1, mm_dtype), w2_ref[...],
                 preferred_element_type=jnp.float32) + b2
    h2 = jnp.maximum(h2, 0.0) + h1

    # output_lin + output_act (Sigmoid), f32 math.
    y = jnp.dot(_maybe_cast(h2, mm_dtype), wo_ref[...],
                preferred_element_type=jnp.float32) + bo
    # sigmoid(y) = 1 / (1 + exp(-y)): exp + approximate reciprocal both issue
    # to the otherwise-idle EUP slot (no VPU divide in the epilogue).
    o_ref[...] = pl.reciprocal(1.0 + jnp.exp(-y), approx=True).astype(o_ref.dtype)


def _pick_block_b(B):
    """Batch tile: multiple of 8 sublanes; even grid (usually 2) for the two
    v7x TensorCores; tiles up to _MAX_TILE_ROWS to amortize per-step overhead
    on single-TC v5e/v6e."""
    if B < 16:
        return _round_up(max(B, 1), 8)            # single tiny tile
    pairs = max(1, pl.cdiv(B, 2 * _MAX_TILE_ROWS))
    return _round_up(pl.cdiv(B, 2 * pairs), 8)    # grid ~= 2 * pairs (even)


@functools.partial(jax.jit, static_argnames=("block_b", "matmul_dtype"))
def recursive_mlp_block(x, w0, b0, w1, b1, w2, b2, wo, bo,
                        *, block_b=None, matmul_dtype=None):
    """x: [B, D].  w*: [in, out] (already transposed).  b*: [1, out].

    matmul_dtype: None -> use weight dtype (f32); jnp.bfloat16 -> bf16 MXU
    operands with f32 accumulation (all of v5e/v6e/v7x take bf16 MXU operands;
    elementwise math stays f32).  If x is already bf16 the kernel also reads
    and writes bf16 activations (halving the B-scaling HBM traffic) without
    any wrapper-side cast.
    """
    B, D = x.shape
    H = w0.shape[1]
    O = wo.shape[1]

    if block_b is None:
        block_b = _pick_block_b(B)
    block_b = max(8, min(_round_up(block_b, 8), _round_up(B, 8)))
    grid = (pl.cdiv(B, block_b),)   # ragged edge handled by Pallas (no pad/slice)

    mm_dtype = jnp.dtype(matmul_dtype) if matmul_dtype is not None else w0.dtype
    w0c, w1c, w2c, woc = (_maybe_cast(w, mm_dtype) for w in (w0, w1, w2, wo))
    b0c, b1c, b2c, boc = (_maybe_cast(b, jnp.float32) for b in (b0, b1, b2, bo))

    out_itemsize = jnp.dtype(x.dtype).itemsize
    x_itemsize = jnp.dtype(x.dtype).itemsize
    weight_bytes = int(sum(int(a.size) * jnp.dtype(a.dtype).itemsize
                           for a in (w0c, b0c, w1c, b1c, w2c, b2c, woc, boc)))

    # VMEM budget: single-buffered weights + double-buffered x/out tiles +
    # f32 intermediates, with 2x headroom; capped safely below v7x's 64 MiB.
    act_bytes = block_b * (2 * D * x_itemsize + 2 * O * out_itemsize + 8 * H * 4)
    vmem_limit = int(min(48 * 1024 * 1024,
                         max(8 * 1024 * 1024, 2 * (weight_bytes + act_bytes))))

    cost = pl.CostEstimate(
        flops=int(2 * B * (D * H + 2 * H * H + H * O) + B * (5 * H + 2 * O)),
        transcendentals=int(2 * B * O),     # exp + reciprocal per output element
        bytes_accessed=int(B * D * x_itemsize
                           + weight_bytes
                           + B * O * out_itemsize),
    )

    def wspec(shape):
        # Constant block index across the grid -> single buffer is enough.
        return pl.BlockSpec(shape, lambda i: (0, 0),
                            pipeline_mode=pl.Buffered(1))

    out = pl.pallas_call(
        _recursive_mlp_kernel,
        out_shape=jax.ShapeDtypeStruct((B, O), x.dtype),
        grid_spec=pltpu.PrefetchScalarGridSpec(
            num_scalar_prefetch=0,
            grid=grid,
            in_specs=[
                pl.BlockSpec((block_b, D), lambda i: (i, 0)),   # x tile (pipelined)
                wspec((D, H)), wspec((1, H)),                   # W0, b0
                wspec((H, H)), wspec((1, H)),                   # W1, b1
                wspec((H, H)), wspec((1, H)),                   # W2, b2
                wspec((H, O)), wspec((1, O)),                   # Wo, bo
            ],
            out_specs=pl.BlockSpec((block_b, O), lambda i: (i, 0)),
        ),
        compiler_params=pltpu.CompilerParams(
            dimension_semantics=("parallel",),
            vmem_limit_bytes=vmem_limit),
        cost_estimate=cost,
    )(x, w0c, b0c, w1c, b1c, w2c, b2c, woc, boc)

    return out


def _reference(x, w0, b0, w1, b1, w2, b2, wo, bo):
    h0 = jax.nn.relu(x @ w0 + b0)
    h1 = jax.nn.relu(h0 @ w1 + b1) + h0
    h2 = jax.nn.relu(h1 @ w2 + b2) + h1
    return jax.nn.sigmoid(h2 @ wo + bo)


if __name__ == "__main__":
    # Module config: input_dim=16, hidden_units=[32, 32, 32], output_dim=8,
    # output_activation='sigmoid'.  (Equal hidden units are required by the
    # module's own residual add `mlp(prev_output) + prev_output`.)
    B, D, H, O = 8, 16, 32, 8

    key = jax.random.PRNGKey(0)
    ks = jax.random.split(key, 10)

    # Deterministic PyTorch-Linear-style init, U(-1/sqrt(fan_in), 1/sqrt(fan_in)).
    def lin(kw, kb, fan_in, fan_out):
        bound = 1.0 / jnp.sqrt(float(fan_in))
        w = jax.random.uniform(kw, (fan_in, fan_out), jnp.float32, -bound, bound)
        b = jax.random.uniform(kb, (1, fan_out), jnp.float32, -bound, bound)
        return w, b

    x = jax.random.normal(ks[0], (B, D), jnp.float32)
    w0, b0 = lin(ks[1], ks[2], D, H)
    w1, b1 = lin(ks[3], ks[4], H, H)
    w2, b2 = lin(ks[5], ks[6], H, H)
    wo, bo = lin(ks[7], ks[8], H, O)

    ref = _reference(x, w0, b0, w1, b1, w2, b2, wo, bo)

    # f32 matmul path (approx-reciprocal sigmoid: abs err <= ~2.5e-4).
    out = jax.block_until_ready(
        recursive_mlp_block(x, w0, b0, w1, b1, w2, b2, wo, bo))
    assert out.shape == (B, O), out.shape
    assert jnp.allclose(out, ref, atol=2e-3, rtol=2e-3), "f32 mismatch vs reference"

    # bf16-operand / f32-accumulate matmul path (MXU fast path on v5e/v6e/v7x).
    out_bf16 = jax.block_until_ready(
        recursive_mlp_block(x, w0, b0, w1, b1, w2, b2, wo, bo,
                            matmul_dtype=jnp.bfloat16))
    assert jnp.allclose(out_bf16, ref, atol=2e-2, rtol=2e-2), "bf16 mismatch vs reference"

    # Ragged-edge / even-grid path: B not a multiple of the tile -> grid of 2
    # uneven tiles, no wrapper-side pad or slice.
    B2 = 100
    x2 = jax.random.normal(ks[9], (B2, D), jnp.float32)
    ref2 = _reference(x2, w0, b0, w1, b1, w2, b2, wo, bo)
    out2 = jax.block_until_ready(
        recursive_mlp_block(x2, w0, b0, w1, b1, w2, b2, wo, bo))
    assert out2.shape == (B2, O), out2.shape
    assert jnp.allclose(out2, ref2, atol=2e-3, rtol=2e-3), "ragged-edge mismatch"

    print("KERNEL_OK")
</pallas_src>

<mosaic_0001>
module attributes {stable_mosaic.version = 11 : i64} {
  func.func @_recursive_mlp_kernel(%arg0: i32, %arg1: memref<8x16xf32, #tpu.memory_space<vmem>>, %arg2: memref<16x32xf32, #tpu.memory_space<vmem>>, %arg3: memref<1x32xf32, #tpu.memory_space<vmem>>, %arg4: memref<32x32xf32, #tpu.memory_space<vmem>>, %arg5: memref<1x32xf32, #tpu.memory_space<vmem>>, %arg6: memref<32x32xf32, #tpu.memory_space<vmem>>, %arg7: memref<1x32xf32, #tpu.memory_space<vmem>>, %arg8: memref<32x8xf32, #tpu.memory_space<vmem>>, %arg9: memref<1x8xf32, #tpu.memory_space<vmem>>, %arg10: memref<8x8xf32, #tpu.memory_space<vmem>>) attributes {dimension_semantics = [#tpu.dimension_semantics<parallel>], iteration_bounds = array<i64: 1>, scalar_prefetch = 0 : i64, scratch_operands = 0 : i64, tpu.core_type = #tpu.core_type<tc>, window_params = [{transform_indices = @transform_0, window_bounds = array<i64: 8, 16>}, {pipeline_mode = #tpu.pipeline_mode<synchronous>, transform_indices = @transform_1, window_bounds = array<i64: 16, 32>}, {pipeline_mode = #tpu.pipeline_mode<synchronous>, transform_indices = @transform_2, window_bounds = array<i64: 1, 32>}, {pipeline_mode = #tpu.pipeline_mode<synchronous>, transform_indices = @transform_3, window_bounds = array<i64: 32, 32>}, {pipeline_mode = #tpu.pipeline_mode<synchronous>, transform_indices = @transform_4, window_bounds = array<i64: 1, 32>}, {pipeline_mode = #tpu.pipeline_mode<synchronous>, transform_indices = @transform_5, window_bounds = array<i64: 32, 32>}, {pipeline_mode = #tpu.pipeline_mode<synchronous>, transform_indices = @transform_6, window_bounds = array<i64: 1, 32>}, {pipeline_mode = #tpu.pipeline_mode<synchronous>, transform_indices = @transform_7, window_bounds = array<i64: 32, 8>}, {pipeline_mode = #tpu.pipeline_mode<synchronous>, transform_indices = @transform_8, window_bounds = array<i64: 1, 8>}, {transform_indices = @transform_9, window_bounds = array<i64: 8, 8>}]} {
    %c0 = arith.constant 0 : index
    %c0_0 = arith.constant 0 : index
    %0 = vector.load %arg3[%c0, %c0_0] : memref<1x32xf32, #tpu.memory_space<vmem>>, vector<1x32xf32>
    %c0_1 = arith.constant 0 : index
    %c0_2 = arith.constant 0 : index
    %1 = vector.load %arg5[%c0_1, %c0_2] : memref<1x32xf32, #tpu.memory_space<vmem>>, vector<1x32xf32>
    %c0_3 = arith.constant 0 : index
    %c0_4 = arith.constant 0 : index
    %2 = vector.load %arg7[%c0_3, %c0_4] : memref<1x32xf32, #tpu.memory_space<vmem>>, vector<1x32xf32>
    %c0_5 = arith.constant 0 : index
    %c0_6 = arith.constant 0 : index
    %3 = vector.load %arg9[%c0_5, %c0_6] : memref<1x8xf32, #tpu.memory_space<vmem>>, vector<1x8xf32>
    %c0_7 = arith.constant 0 : index
    %c0_8 = arith.constant 0 : index
    %4 = vector.load %arg1[%c0_7, %c0_8] : memref<8x16xf32, #tpu.memory_space<vmem>>, vector<8x16xf32>
    %c0_9 = arith.constant 0 : index
    %c0_10 = arith.constant 0 : index
    %5 = vector.load %arg2[%c0_9, %c0_10] : memref<16x32xf32, #tpu.memory_space<vmem>>, vector<16x32xf32>
    %cst = arith.constant dense<0.000000e+00> : vector<8x32xf32>
    %6 = tpu.matmul %4, %5, %cst {dimension_numbers = #tpu.dot_dimension_numbers<[1], [0], [0], [1], [0, 0, 1, 1], [], []>} : vector<8x16xf32>, vector<16x32xf32>, vector<8x32xf32> -> vector<8x32xf32>
    %7 = vector.broadcast %0 : vector<1x32xf32> to vector<8x32xf32>
    %8 = arith.addf %6, %7 : vector<8x32xf32>
    %cst_11 = arith.constant 0.000000e+00 : f32
    %9 = vector.broadcast %cst_11 : f32 to vector<8x32xf32>
    %10 = arith.maximumf %8, %9 : vector<8x32xf32>
    %c0_12 = arith.constant 0 : index
    %c0_13 = arith.constant 0 : index
    %11 = vector.load %arg4[%c0_12, %c0_13] : memref<32x32xf32, #tpu.memory_space<vmem>>, vector<32x32xf32>
    %cst_14 = arith.constant dense<0.000000e+00> : vector<8x32xf32>
    %12 = tpu.matmul %10, %11, %cst_14 {dimension_numbers = #tpu.dot_dimension_numbers<[1], [0], [0], [1], [0, 0, 1, 1], [], []>} : vector<8x32xf32>, vector<32x32xf32>, vector<8x32xf32> -> vector<8x32xf32>
    %13 = vector.broadcast %1 : vector<1x32xf32> to vector<8x32xf32>
    %14 = arith.addf %12, %13 : vector<8x32xf32>
    %cst_15 = arith.constant 0.000000e+00 : f32
    %15 = vector.broadcast %cst_15 : f32 to vector<8x32xf32>
    %16 = arith.maximumf %14, %15 : vector<8x32xf32>
    %17 = arith.addf %16, %10 : vector<8x32xf32>
    %c0_16 = arith.constant 0 : index
    %c0_17 = arith.constant 0 : index
    %18 = vector.load %arg6[%c0_16, %c0_17] : memref<32x32xf32, #tpu.memory_space<vmem>>, vector<32x32xf32>
    %cst_18 = arith.constant dense<0.000000e+00> : vector<8x32xf32>
    %19 = tpu.matmul %17, %18, %cst_18 {dimension_numbers = #tpu.dot_dimension_numbers<[1], [0], [0], [1], [0, 0, 1, 1], [], []>} : vector<8x32xf32>, vector<32x32xf32>, vector<8x32xf32> -> vector<8x32xf32>
    %20 = vector.broadcast %2 : vector<1x32xf32> to vector<8x32xf32>
    %21 = arith.addf %19, %20 : vector<8x32xf32>
    %cst_19 = arith.constant 0.000000e+00 : f32
    %22 = vector.broadcast %cst_19 : f32 to vector<8x32xf32>
    %23 = arith.maximumf %21, %22 : vector<8x32xf32>
    %24 = arith.addf %23, %17 : vector<8x32xf32>
    %c0_20 = arith.constant 0 : index
    %c0_21 = arith.constant 0 : index
    %25 = vector.load %arg8[%c0_20, %c0_21] : memref<32x8xf32, #tpu.memory_space<vmem>>, vector<32x8xf32>
    %cst_22 = arith.constant dense<0.000000e+00> : vector<8x8xf32>
    %26 = tpu.matmul %24, %25, %cst_22 {dimension_numbers = #tpu.dot_dimension_numbers<[1], [0], [0], [1], [0, 0, 1, 1], [], []>} : vector<8x32xf32>, vector<32x8xf32>, vector<8x8xf32> -> vector<8x8xf32>
    %27 = vector.broadcast %3 : vector<1x8xf32> to vector<8x8xf32>
    %28 = arith.addf %26, %27 : vector<8x8xf32>
    %cst_23 = arith.constant 0.000000e+00 : f32
    %29 = vector.broadcast %cst_23 : f32 to vector<8x8xf32>
    %30 = arith.subf %29, %28 : vector<8x8xf32>
    %31 = math.exp %30 : vector<8x8xf32>
    %cst_24 = arith.constant 1.000000e+00 : f32
    %32 = vector.broadcast %cst_24 : f32 to vector<8x8xf32>
    %33 = arith.addf %32, %31 : vector<8x8xf32>
    %34 = tpu.reciprocal %33 {approx = true} : vector<8x8xf32> -> vector<8x8xf32>
    %c0_25 = arith.constant 0 : index
    %c0_26 = arith.constant 0 : index
    %35 = vector.load %arg10[%c0_25, %c0_26] : memref<8x8xf32, #tpu.memory_space<vmem>>, vector<8x8xf32>
    tpu.vector_store %arg10[%c0_25, %c0_26], %34 {strides = array<i32>} : memref<8x8xf32, #tpu.memory_space<vmem>>, vector<8x8xf32>,
    return
  }
  func.func @transform_0(%arg0: i32) -> (i32, i32) {
    %c0_i32 = arith.constant 0 : i32
    %c0_i32_0 = arith.constant 0 : i32
    return %arg0, %c0_i32 : i32, i32
  }
  func.func @transform_1(%arg0: i32) -> (i32, i32) {
    %c0_i32 = arith.constant 0 : i32
    %c0_i32_0 = arith.constant 0 : i32
    %c0_i32_1 = arith.constant 0 : i32
    return %c0_i32, %c0_i32_0 : i32, i32
  }
  func.func @transform_2(%arg0: i32) -> (i32, i32) {
    %c0_i32 = arith.constant 0 : i32
    %c0_i32_0 = arith.constant 0 : i32
    %c0_i32_1 = arith.constant 0 : i32
    return %c0_i32, %c0_i32_0 : i32, i32
  }
  func.func @transform_3(%arg0: i32) -> (i32, i32) {
    %c0_i32 = arith.constant 0 : i32
    %c0_i32_0 = arith.constant 0 : i32
    %c0_i32_1 = arith.constant 0 : i32
    return %c0_i32, %c0_i32_0 : i32, i32
  }
  func.func @transform_4(%arg0: i32) -> (i32, i32) {
    %c0_i32 = arith.constant 0 : i32
    %c0_i32_0 = arith.constant 0 : i32
    %c0_i32_1 = arith.constant 0 : i32
    return %c0_i32, %c0_i32_0 : i32, i32
  }
  func.func @transform_5(%arg0: i32) -> (i32, i32) {
    %c0_i32 = arith.constant 0 : i32
    %c0_i32_0 = arith.constant 0 : i32
    %c0_i32_1 = arith.constant 0 : i32
    return %c0_i32, %c0_i32_0 : i32, i32
  }
  func.func @transform_6(%arg0: i32) -> (i32, i32) {
    %c0_i32 = arith.constant 0 : i32
    %c0_i32_0 = arith.constant 0 : i32
    %c0_i32_1 = arith.constant 0 : i32
    return %c0_i32, %c0_i32_0 : i32, i32
  }
  func.func @transform_7(%arg0: i32) -> (i32, i32) {
    %c0_i32 = arith.constant 0 : i32
    %c0_i32_0 = arith.constant 0 : i32
    %c0_i32_1 = arith.constant 0 : i32
    return %c0_i32, %c0_i32_0 : i32, i32
  }
  func.func @transform_8(%arg0: i32) -> (i32, i32) {
    %c0_i32 = arith.constant 0 : i32
    %c0_i32_0 = arith.constant 0 : i32
    %c0_i32_1 = arith.constant 0 : i32
    return %c0_i32, %c0_i32_0 : i32, i32
  }
  func.func @transform_9(%arg0: i32) -> (i32, i32) {
    %c0_i32 = arith.constant 0 : i32
    %c0_i32_0 = arith.constant 0 : i32
    return %arg0, %c0_i32 : i32, i32
  }
}

</mosaic_0001>

<llo_original>
// kernel: recursive_mlp_block.1
$region0: #{recursive_mlp_block.1}
  #allocation0 [shape = 'u32[]', space=smem, size = 0x4, offset = 0x4, fixed_abs, tag = 'smem constant byte address 0x4 - core index']
  #allocation1 [shape = 'u32[144,128]{1,0:T(1,128)}', space=vmem, size = 0x12000, scoped, tag = 'internal scratch']
  %s0 = inlined_call_operand.hbm [shape: f32[8,16], index: 0, kind: input, shape index: {}]
  %s1 = inlined_call_operand.vmem [shape: f32[16,32], index: 1, kind: input, shape index: {}]
  %s2 = inlined_call_operand.vmem [shape: f32[1,32], index: 2, kind: input, shape index: {}]
  %s3 = inlined_call_operand.vmem [shape: f32[32,32], index: 3, kind: input, shape index: {}]
  %s4 = inlined_call_operand.vmem [shape: f32[1,32], index: 4, kind: input, shape index: {}]
  %s5 = inlined_call_operand.hbm [shape: f32[32,32], index: 5, kind: input, shape index: {}]
  %s6 = inlined_call_operand.vmem [shape: f32[1,32], index: 6, kind: input, shape index: {}]
  %s7 = inlined_call_operand.vmem [shape: f32[32,8], index: 7, kind: input, shape index: {}]
  %s8 = inlined_call_operand.vmem [shape: f32[1,8], index: 8, kind: input, shape index: {}]
  %s9 = inlined_call_operand.hbm [shape: f32[8,8], index: 9, kind: output, shape index: {}]
  %s10 = sld [smem:[#allocation0]]
  $region54: #{recursive_mlp_block.1} parent=0
    _
  %s12 = ssub.s32 1, %s10
  %s13 = scalar_select 0, %s12, %s10
  $region1: #{recursive_mlp_block.1} parent=0
    #allocation2 [shape = 'u8[4096]{0}', space=vmem, size = 0x1000, scoped, tag = 'input window, operand 0, single buffered']
    #allocation3 [shape = 's32[1]{0}', space=sflag, size = 0x4, scoped, tag = 'scoped memory for recursive_mlp_block.1']
    #allocation4 [shape = 's32[1]{0}', space=sflag, size = 0x4, scoped, tag = 'scoped memory for recursive_mlp_block.1']
    #allocation5 [shape = 'u8[16384]{0}', space=vmem, size = 0x4000, scoped, tag = 'input window, operand 5, single buffered']
    #allocation6 [shape = 's32[1]{0}', space=sflag, size = 0x4, scoped, tag = 'scoped memory for recursive_mlp_block.1']
    #allocation7 [shape = 'u8[4096]{0}', space=vmem, size = 0x1000, scoped, tag = 'output window, operand 0, single buffered']
    %14 = vsyncpa [#allocation3], 0
    %15 = vsyncpa [#allocation6], 0
    %16 = vsyncpa [#allocation4], 0
    // Predicated region
    $region2: #{recursive_mlp_block.1} parent=1 // pred_check
      _
    $region3: #{recursive_mlp_block.1} parent=1 // pred_check_branch
      %18 = sbr.rel (0) target = $region5
    $region4: #{recursive_mlp_block.1} parent=1 // pred_region
      %s20 = ssub.s32 128, 128
      %21 = vsyncadd [#allocation3], %s20
      %s23 = sshll.u32 [#allocation2], 4
      %s24 = int_to_ptr.vmem [resolvable:$true] %s23
      %26 = dma.hbm_to_vmem [thread:$0]  %s0, 128, %s24, [#allocation3]
    $region5: #{recursive_mlp_block.1} parent=1 // pred_fallthru
      _
    // Predicated region
    $region6: #{recursive_mlp_block.1} parent=1 // pred_check
      _
    $region7: #{recursive_mlp_block.1} parent=1 // pred_check_branch
      %28 = sbr.rel (0) target = $region9
    $region8: #{recursive_mlp_block.1} parent=1 // pred_region
      _
    $region9: #{recursive_mlp_block.1} parent=1 // pred_fallthru
      _
    // Predicated region
    $region10: #{recursive_mlp_block.1} parent=1 // pred_check
      _
    $region11: #{recursive_mlp_block.1} parent=1 // pred_check_branch
      %30 = sbr.rel (0) target = $region13
    $region12: #{recursive_mlp_block.1} parent=1 // pred_region
      _
    $region13: #{recursive_mlp_block.1} parent=1 // pred_fallthru
      _
    // Predicated region
    $region14: #{recursive_mlp_block.1} parent=1 // pred_check
      _
    $region15: #{recursive_mlp_block.1} parent=1 // pred_check_branch
      %32 = sbr.rel (0) target = $region17
    $region16: #{recursive_mlp_block.1} parent=1 // pred_region
      _
    $region17: #{recursive_mlp_block.1} parent=1 // pred_fallthru
      _
    // Predicated region
    $region18: #{recursive_mlp_block.1} parent=1 // pred_check
      _
    $region19: #{recursive_mlp_block.1} parent=1 // pred_check_branch
      %34 = sbr.rel (0) target = $region21
    $region20: #{recursive_mlp_block.1} parent=1 // pred_region
      _
    $region21: #{recursive_mlp_block.1} parent=1 // pred_fallthru
      _
    // Predicated region
    $region22: #{recursive_mlp_block.1} parent=1 // pred_check
      _
    $region23: #{recursive_mlp_block.1} parent=1 // pred_check_branch
      %36 = sbr.rel (0) target = $region25
    $region24: #{recursive_mlp_block.1} parent=1 // pred_region
      %s38 = ssub.s32 512, 512
      %39 = vsyncadd [#allocation6], %s38
      %s40 = sshll.u32 [#allocation5], 4
      %s41 = int_to_ptr.vmem [resolvable:$true] %s40
      %46 = dma.hbm_to_vmem [thread:$0]  %s5, 512, %s41, [#allocation6], 128, 128, 8
    $region25: #{recursive_mlp_block.1} parent=1 // pred_fallthru
      _
    // Predicated region
    $region26: #{recursive_mlp_block.1} parent=1 // pred_check
      _
    $region27: #{recursive_mlp_block.1} parent=1 // pred_check_branch
      %48 = sbr.rel (0) target = $region29
    $region28: #{recursive_mlp_block.1} parent=1 // pred_region
      _
    $region29: #{recursive_mlp_block.1} parent=1 // pred_fallthru
      _
    // Predicated region
    $region30: #{recursive_mlp_block.1} parent=1 // pred_check
      _
    $region31: #{recursive_mlp_block.1} parent=1 // pred_check_branch
      %50 = sbr.rel (0) target = $region33
    $region32: #{recursive_mlp_block.1} parent=1 // pred_region
      _
    $region33: #{recursive_mlp_block.1} parent=1 // pred_fallthru
      _
    // Predicated region
    $region34: #{recursive_mlp_block.1} parent=1 // pred_check
      _
    $region35: #{recursive_mlp_block.1} parent=1 // pred_check_branch
      %52 = sbr.rel (0) target = $region37
    $region36: #{recursive_mlp_block.1} parent=1 // pred_region
      _
    $region37: #{recursive_mlp_block.1} parent=1 // pred_fallthru
      _
    // Predicated region
    $region38: #{recursive_mlp_block.1} parent=1 // pred_check
      _
    $region39: #{recursive_mlp_block.1} parent=1 // pred_check_branch
      %54 = sbr.rel (0) target = $region41
    $region40: #{recursive_mlp_block.1} parent=1 // pred_region
      %55 = dma.done [#allocation3], 128
    $region41: #{recursive_mlp_block.1} parent=1 // pred_fallthru
      _
    // Predicated region
    $region42: #{recursive_mlp_block.1} parent=1 // pred_check
      _
    $region43: #{recursive_mlp_block.1} parent=1 // pred_check_branch
      %57 = sbr.rel (0) target = $region45
    $region44: #{recursive_mlp_block.1} parent=1 // pred_region
      %58 = dma.done [#allocation6], 512
    $region45: #{recursive_mlp_block.1} parent=1 // pred_fallthru
      _
    %v59 = vld [vmem:[%s2] sm:$0x1]
    %v60 = vld [vmem:[%s4] sm:$0x1]
    %v61 = vld [vmem:[%s6] sm:$0x1]
    %v62 = vld [vmem:[%s8] sm:$0x1]
    %v63 = vld [vmem:[#allocation2] sm:$0xff]
    %v64 = vld [vmem:[%s1] sm:$0xff]
    %v65 = vld [vmem:[%s1 + $0x8] sm:$0xff]
    %v67 = vlaneseq
    %v68 = vshrl.u32 %v67, 7
    %v69 = vsub.s32 0, %v68
    %v70 = vrot.slane %v59, %v69
    %vm72 = vcmask 130048
    %v74 = vsel %vm72, %v63, 0
    %76 = vmatprep.subr.mxu0 0.0
    %77 = vmatpush1.msra.mxu0 %v64
    %78 = vmatprep.subr.mxu0 0.0
    %79 = vmatpush1.msra.mxu0 %v65
    %80 = vmatprep.subr.mxu0 0.0
    %81 = vmatpush1.msra.mxu0 0.0
    %82 = vmatprep.subr.mxu0 0.0
    %83 = vmatpush1.msra.mxu0 0.0
    %84 = vmatprep.subr.mxu0 0.0
    %85 = vmatpush1.msra.mxu0 0.0
    %86 = vmatprep.subr.mxu0 0.0
    %87 = vmatpush1.msra.mxu0 0.0
    %88 = vmatprep.subr.mxu0 0.0
    %89 = vmatpush1.msra.mxu0 0.0
    %90 = vmatprep.subr.mxu0 0.0
    %91 = vmatpush1.msra.mxu0 0.0
    %92 = vmatprep.subr.mxu0 0.0
    %93 = vmatpush1.msra.mxu0 0.0
    %94 = vmatprep.subr.mxu0 0.0
    %95 = vmatpush1.msra.mxu0 0.0
    %96 = vmatprep.subr.mxu0 0.0
    %97 = vmatpush1.msra.mxu0 0.0
    %98 = vmatprep.subr.mxu0 0.0
    %99 = vmatpush1.msra.mxu0 0.0
    %100 = vmatprep.subr.mxu0 0.0
    %101 = vmatpush1.msra.mxu0 0.0
    %102 = vmatprep.subr.mxu0 0.0
    %103 = vmatpush1.msra.mxu0 0.0
    %104 = vmatprep.subr.mxu0 0.0
    %105 = vmatpush1.msra.mxu0 0.0
    %106 = vmatprep.subr.mxu0 0.0
    %107 = vmatpush1.msra.mxu0 0.0
    %108 = vmatprep.subr.mxu0 0.0
    %109 = vmatpush1.msra.mxu0 0.0
    %110 = vmatprep.subr.mxu0 0.0
    %111 = vmatpush1.msra.mxu0 0.0
    %112 = vmatprep.subr.mxu0 0.0
    %113 = vmatpush1.msra.mxu0 0.0
    %114 = vmatprep.subr.mxu0 0.0
    %115 = vmatpush1.msra.mxu0 0.0
    %116 = vmatprep.subr.mxu0 0.0
    %117 = vmatpush1.msra.mxu0 0.0
    %118 = vmatprep.subr.mxu0 0.0
    %119 = vmatpush1.msra.mxu0 0.0
    %120 = vmatprep.subr.mxu0 0.0
    %121 = vmatpush1.msra.mxu0 0.0
    %122 = vmatprep.subr.mxu0 0.0
    %123 = vmatpush1.msra.mxu0 0.0
    %124 = vmatprep.subr.mxu0 0.0
    %125 = vmatpush1.msra.mxu0 0.0
    %126 = vmatprep.subr.mxu0 0.0
    %127 = vmatpush1.msra.mxu0 0.0
    %128 = vmatprep.subr.mxu0 0.0
    %129 = vmatpush1.msra.mxu0 0.0
    %130 = vmatprep.subr.mxu0 0.0
    %131 = vmatpush1.msra.mxu0 0.0
    %132 = vmatprep.subr.mxu0 0.0
    %133 = vmatpush1.msra.mxu0 0.0
    %134 = vmatprep.subr.mxu0 0.0
    %135 = vmatpush1.msra.mxu0 0.0
    %136 = vmatprep.subr.mxu0 0.0
    %137 = vmatpush1.msra.mxu0 0.0
    %138 = vmatprep.subr.mxu0 0.0
    %139 = vmatpush1.msra.mxu0 0.0
    %140 = vmatprep.mubr.f32.mxu0 0.0
    %141 = vmatmul.mubr.f32.gmra.mrb[0].mxu0 %v74
    %v142 = vpop.f32.mrb[0].mxu0
    %v143 = vadd.f32 %v70, %v142
    %v144 = vpop.f32.mrb[0].mxu0
    %145 = vdwg.mxu0
    %v146 = vmax.f32 %v143, 0.0
    %v147 = vld [vmem:[%s3] sm:$0xff]
    %v148 = vld [vmem:[%s3 + $0x8] sm:$0xff]
    %v149 = vld [vmem:[%s3 + $0x10] sm:$0xff]
    %v150 = vld [vmem:[%s3 + $0x18] sm:$0xff]
    %v152 = vlaneseq
    %v153 = vshrl.u32 %v152, 7
    %v154 = vsub.s32 0, %v153
    %v155 = vrot.slane %v60, %v154
    %vm157 = vcmask 261120
    %v159 = vsel %vm157, %v146, 0
    %161 = vmatprep.subr.mxu0 0.0
    %162 = vmatpush1.msra.mxu0 %v147
    %163 = vmatprep.subr.mxu0 0.0
    %164 = vmatpush1.msra.mxu0 %v148
    %165 = vmatprep.subr.mxu0 0.0
    %166 = vmatpush1.msra.mxu0 %v149
    %167 = vmatprep.subr.mxu0 0.0
    %168 = vmatpush1.msra.mxu0 %v150
    %169 = vmatprep.subr.mxu0 0.0
    %170 = vmatpush1.msra.mxu0 0.0
    %171 = vmatprep.subr.mxu0 0.0
    %172 = vmatpush1.msra.mxu0 0.0
    %173 = vmatprep.subr.mxu0 0.0
    %174 = vmatpush1.msra.mxu0 0.0
    %175 = vmatprep.subr.mxu0 0.0
    %176 = vmatpush1.msra.mxu0 0.0
    %177 = vmatprep.subr.mxu0 0.0
    %178 = vmatpush1.msra.mxu0 0.0
    %179 = vmatprep.subr.mxu0 0.0
    %180 = vmatpush1.msra.mxu0 0.0
    %181 = vmatprep.subr.mxu0 0.0
    %182 = vmatpush1.msra.mxu0 0.0
    %183 = vmatprep.subr.mxu0 0.0
    %184 = vmatpush1.msra.mxu0 0.0
    %185 = vmatprep.subr.mxu0 0.0
    %186 = vmatpush1.msra.mxu0 0.0
    %187 = vmatprep.subr.mxu0 0.0
    %188 = vmatpush1.msra.mxu0 0.0
    %189 = vmatprep.subr.mxu0 0.0
    %190 = vmatpush1.msra.mxu0 0.0
    %191 = vmatprep.subr.mxu0 0.0
    %192 = vmatpush1.msra.mxu0 0.0
    %193 = vmatprep.subr.mxu0 0.0
    %194 = vmatpush1.msra.mxu0 0.0
    %195 = vmatprep.subr.mxu0 0.0
    %196 = vmatpush1.msra.mxu0 0.0
    %197 = vmatprep.subr.mxu0 0.0
    %198 = vmatpush1.msra.mxu0 0.0
    %199 = vmatprep.subr.mxu0 0.0
    %200 = vmatpush1.msra.mxu0 0.0
    %201 = vmatprep.subr.mxu0 0.0
    %202 = vmatpush1.msra.mxu0 0.0
    %203 = vmatprep.subr.mxu0 0.0
    %204 = vmatpush1.msra.mxu0 0.0
    %205 = vmatprep.subr.mxu0 0.0
    %206 = vmatpush1.msra.mxu0 0.0
    %207 = vmatprep.subr.mxu0 0.0
    %208 = vmatpush1.msra.mxu0 0.0
    %209 = vmatprep.subr.mxu0 0.0
    %210 = vmatpush1.msra.mxu0 0.0
    %211 = vmatprep.subr.mxu0 0.0
    %212 = vmatpush1.msra.mxu0 0.0
    %213 = vmatprep.subr.mxu0 0.0
    %214 = vmatpush1.msra.mxu0 0.0
    %215 = vmatprep.subr.mxu0 0.0
    %216 = vmatpush1.msra.mxu0 0.0
    %217 = vmatprep.subr.mxu0 0.0
    %218 = vmatpush1.msra.mxu0 0.0
    %219 = vmatprep.subr.mxu0 0.0
    %220 = vmatpush1.msra.mxu0 0.0
    %221 = vmatprep.subr.mxu0 0.0
    %222 = vmatpush1.msra.mxu0 0.0
    %223 = vmatprep.subr.mxu0 0.0
    %224 = vmatpush1.msra.mxu0 0.0
    %225 = vmatprep.mubr.f32.mxu0 0.0
    %226 = vmatmul.mubr.f32.gmra.mrb[0].mxu0 %v159
    %v227 = vpop.f32.mrb[0].mxu0
    %v228 = vadd.f32 %v155, %v227
    %v229 = vpop.f32.mrb[0].mxu0
    %230 = vdwg.mxu0
    %v231 = vmax.f32 %v228, 0.0
    %v232 = vadd.f32 %v231, %v146
    %v233 = vld [vmem:[#allocation5] sm:$0xff]
    %v234 = vld [vmem:[#allocation5 + $0x8] sm:$0xff]
    %v235 = vld [vmem:[#allocation5 + $0x10] sm:$0xff]
    %v236 = vld [vmem:[#allocation5 + $0x18] sm:$0xff]
    %v238 = vlaneseq
    %v239 = vshrl.u32 %v238, 7
    %v240 = vsub.s32 0, %v239
    %v241 = vrot.slane %v61, %v240
    %v244 = vsel %vm157, %v232, 0
    %246 = vmatprep.subr.mxu0 0.0
    %247 = vmatpush1.msra.mxu0 %v233
    %248 = vmatprep.subr.mxu0 0.0
    %249 = vmatpush1.msra.mxu0 %v234
    %250 = vmatprep.subr.mxu0 0.0
    %251 = vmatpush1.msra.mxu0 %v235
    %252 = vmatprep.subr.mxu0 0.0
    %253 = vmatpush1.msra.mxu0 %v236
    %254 = vmatprep.subr.mxu0 0.0
    %255 = vmatpush1.msra.mxu0 0.0
    %256 = vmatprep.subr.mxu0 0.0
    %257 = vmatpush1.msra.mxu0 0.0
    %258 = vmatprep.subr.mxu0 0.0
    %259 = vmatpush1.msra.mxu0 0.0
    %260 = vmatprep.subr.mxu0 0.0
    %261 = vmatpush1.msra.mxu0 0.0
    %262 = vmatprep.subr.mxu0 0.0
    %263 = vmatpush1.msra.mxu0 0.0
    %264 = vmatprep.subr.mxu0 0.0
    %265 = vmatpush1.msra.mxu0 0.0
    %266 = vmatprep.subr.mxu0 0.0
    %267 = vmatpush1.msra.mxu0 0.0
    %268 = vmatprep.subr.mxu0 0.0
    %269 = vmatpush1.msra.mxu0 0.0
    %270 = vmatprep.subr.mxu0 0.0
    %271 = vmatpush1.msra.mxu0 0.0
    %272 = vmatprep.subr.mxu0 0.0
    %273 = vmatpush1.msra.mxu0 0.0
    %274 = vmatprep.subr.mxu0 0.0
    %275 = vmatpush1.msra.mxu0 0.0
    %276 = vmatprep.subr.mxu0 0.0
    %277 = vmatpush1.msra.mxu0 0.0
    %278 = vmatprep.subr.mxu0 0.0
    %279 = vmatpush1.msra.mxu0 0.0
    %280 = vmatprep.subr.mxu0 0.0
    %281 = vmatpush1.msra.mxu0 0.0
    %282 = vmatprep.subr.mxu0 0.0
    %283 = vmatpush1.msra.mxu0 0.0
    %284 = vmatprep.subr.mxu0 0.0
    %285 = vmatpush1.msra.mxu0 0.0
    %286 = vmatprep.subr.mxu0 0.0
    %287 = vmatpush1.msra.mxu0 0.0
    %288 = vmatprep.subr.mxu0 0.0
    %289 = vmatpush1.msra.mxu0 0.0
    %290 = vmatprep.subr.mxu0 0.0
    %291 = vmatpush1.msra.mxu0 0.0
    %292 = vmatprep.subr.mxu0 0.0
    %293 = vmatpush1.msra.mxu0 0.0
    %294 = vmatprep.subr.mxu0 0.0
    %295 = vmatpush1.msra.mxu0 0.0
    %296 = vmatprep.subr.mxu0 0.0
    %297 = vmatpush1.msra.mxu0 0.0
    %298 = vmatprep.subr.mxu0 0.0
    %299 = vmatpush1.msra.mxu0 0.0
    %300 = vmatprep.subr.mxu0 0.0
    %301 = vmatpush1.msra.mxu0 0.0
    %302 = vmatprep.subr.mxu0 0.0
    %303 = vmatpush1.msra.mxu0 0.0
    %304 = vmatprep.subr.mxu0 0.0
    %305 = vmatpush1.msra.mxu0 0.0
    %306 = vmatprep.subr.mxu0 0.0
    %307 = vmatpush1.msra.mxu0 0.0
    %308 = vmatprep.subr.mxu0 0.0
    %309 = vmatpush1.msra.mxu0 0.0
    %310 = vmatprep.mubr.f32.mxu0 0.0
    %311 = vmatmul.mubr.f32.gmra.mrb[0].mxu0 %v244
    %v312 = vpop.f32.mrb[0].mxu0
    %v313 = vadd.f32 %v241, %v312
    %v314 = vpop.f32.mrb[0].mxu0
    %315 = vdwg.mxu0
    %v316 = vmax.f32 %v313, 0.0
    %v317 = vadd.f32 %v316, %v232
    %v318 = vld [vmem:[%s7] sm:$0xff]
    %v319 = vld [vmem:[%s7 + $0x8] sm:$0xff]
    %v320 = vld [vmem:[%s7 + $0x10] sm:$0xff]
    %v321 = vld [vmem:[%s7 + $0x18] sm:$0xff]
    %v323 = vlaneseq
    %v324 = vshrl.u32 %v323, 7
    %v325 = vsub.s32 0, %v324
    %v326 = vrot.slane %v62, %v325
    %v329 = vsel %vm157, %v317, 0
    %331 = vmatprep.subr.mxu0 0.0
    %332 = vmatpush1.msra.mxu0 %v318
    %333 = vmatprep.subr.mxu0 0.0
    %334 = vmatpush1.msra.mxu0 %v319
    %335 = vmatprep.subr.mxu0 0.0
    %336 = vmatpush1.msra.mxu0 %v320
    %337 = vmatprep.subr.mxu0 0.0
    %338 = vmatpush1.msra.mxu0 %v321
    %339 = vmatprep.subr.mxu0 0.0
    %340 = vmatpush1.msra.mxu0 0.0
    %341 = vmatprep.subr.mxu0 0.0
    %342 = vmatpush1.msra.mxu0 0.0
    %343 = vmatprep.subr.mxu0 0.0
    %344 = vmatpush1.msra.mxu0 0.0
    %345 = vmatprep.subr.mxu0 0.0
    %346 = vmatpush1.msra.mxu0 0.0
    %347 = vmatprep.subr.mxu0 0.0
    %348 = vmatpush1.msra.mxu0 0.0
    %349 = vmatprep.subr.mxu0 0.0
    %350 = vmatpush1.msra.mxu0 0.0
    %351 = vmatprep.subr.mxu0 0.0
    %352 = vmatpush1.msra.mxu0 0.0
    %353 = vmatprep.subr.mxu0 0.0
    %354 = vmatpush1.msra.mxu0 0.0
    %355 = vmatprep.subr.mxu0 0.0
    %356 = vmatpush1.msra.mxu0 0.0
    %357 = vmatprep.subr.mxu0 0.0
    %358 = vmatpush1.msra.mxu0 0.0
    %359 = vmatprep.subr.mxu0 0.0
    %360 = vmatpush1.msra.mxu0 0.0
    %361 = vmatprep.subr.mxu0 0.0
    %362 = vmatpush1.msra.mxu0 0.0
    %363 = vmatprep.subr.mxu0 0.0
    %364 = vmatpush1.msra.mxu0 0.0
    %365 = vmatprep.subr.mxu0 0.0
    %366 = vmatpush1.msra.mxu0 0.0
    %367 = vmatprep.subr.mxu0 0.0
    %368 = vmatpush1.msra.mxu0 0.0
    %369 = vmatprep.subr.mxu0 0.0
    %370 = vmatpush1.msra.mxu0 0.0
    %371 = vmatprep.subr.mxu0 0.0
    %372 = vmatpush1.msra.mxu0 0.0
    %373 = vmatprep.subr.mxu0 0.0
    %374 = vmatpush1.msra.mxu0 0.0
    %375 = vmatprep.subr.mxu0 0.0
    %376 = vmatpush1.msra.mxu0 0.0
    %377 = vmatprep.subr.mxu0 0.0
    %378 = vmatpush1.msra.mxu0 0.0
    %379 = vmatprep.subr.mxu0 0.0
    %380 = vmatpush1.msra.mxu0 0.0
    %381 = vmatprep.subr.mxu0 0.0
    %382 = vmatpush1.msra.mxu0 0.0
    %383 = vmatprep.subr.mxu0 0.0
    %384 = vmatpush1.msra.mxu0 0.0
    %385 = vmatprep.subr.mxu0 0.0
    %386 = vmatpush1.msra.mxu0 0.0
    %387 = vmatprep.subr.mxu0 0.0
    %388 = vmatpush1.msra.mxu0 0.0
    %389 = vmatprep.subr.mxu0 0.0
    %390 = vmatpush1.msra.mxu0 0.0
    %391 = vmatprep.subr.mxu0 0.0
    %392 = vmatpush1.msra.mxu0 0.0
    %393 = vmatprep.subr.mxu0 0.0
    %394 = vmatpush1.msra.mxu0 0.0
    %395 = vmatprep.mubr.f32.mxu0 0.0
    %396 = vmatmul.mubr.f32.gmra.mrb[0].mxu0 %v329
    %v397 = vpop.f32.mrb[0].mxu0
    %v398 = vadd.f32 %v326, %v397
    %v399 = vpop.f32.mrb[0].mxu0
    %400 = vdwg.mxu0
    %v401 = vsub.f32 0.0, %v398
    %v402 = vmul.f32 %v401, 1.442695
    %v403 = vpow.pop %v402
    %v404 = vadd.f32 %v403, 1.0
    %v405 = vrcp.pop %v404
    %vm406 = vcmask 64512
    %407 = vst.msk [vmem:[#allocation7] sm:$0xff] %vm406, %v405
    // Predicated region
    $region46: #{recursive_mlp_block.1} parent=1 // pred_check
      _
    $region47: #{recursive_mlp_block.1} parent=1 // pred_check_branch
      %409 = sbr.rel (0) target = $region49
    $region48: #{recursive_mlp_block.1} parent=1 // pred_region
      %s411 = ssub.s32 128, 128
      %412 = vsyncadd [#allocation4], %s411
      %s414 = sshll.u32 [#allocation7], 4
      %s415 = int_to_ptr.vmem [resolvable:$true] %s414
      %417 = dma.vmem_to_hbm [thread:$0]  %s415, 128, %s9, [#allocation4]
    $region49: #{recursive_mlp_block.1} parent=1 // pred_fallthru
      _
    // Predicated region
    $region50: #{recursive_mlp_block.1} parent=1 // pred_check
      _
    $region51: #{recursive_mlp_block.1} parent=1 // pred_check_branch
      %419 = sbr.rel (0) target = $region53
    $region52: #{recursive_mlp_block.1} parent=1 // pred_region
      %420 = dma.done [#allocation4], 128
    $region53: #{recursive_mlp_block.1} parent=1 // pred_fallthru
      _
    %421 = vsyncpa [#allocation3], 1
    %422 = vsyncpa [#allocation6], 1
    %423 = vsyncpa [#allocation4], 1

</llo_original>
